<compile_context>
chip_gen: v7x
topology: tpu7x:2x2x1
jax: 0.10.0
libtpu: 0.0.40
codegen_flags: <defaults>
</compile_context>

<pallas_src>
import functools

import jax
import jax.numpy as jnp
from jax.experimental import pallas as pl
from jax.experimental.pallas import tpu as pltpu


_MAX_BATCH_TILE = 2048   # ~4-5 MiB VMEM footprint at H=256 -> fits every gen
_MIN_SPLIT_BATCH = 32    # below this, splitting the grid buys nothing


def _round_up(x, m):
    return ((x + m - 1) // m) * m


def _qnet_kernel(s_ref, a_ref, w1s_ref, w1a_ref, b1_ref, w2_ref, b2_ref,
                 w3_ref, b3_ref, o_ref):
    """q = relu(relu([s||a]@W1 + b1)@W2 + b2)@W3 + b3 on one batch tile."""
    s = s_ref[...].astype(jnp.bfloat16)                        # (TB, Ds)
    a = a_ref[...].astype(jnp.bfloat16)                        # (TB, Da)

    # Layer 1: concat folded into a row-split of W1 (no [s||a] materialized).
    h1 = jnp.dot(s, w1s_ref[...], preferred_element_type=jnp.float32)
    h1 = h1 + jnp.dot(a, w1a_ref[...], preferred_element_type=jnp.float32)
    # bias + ReLU in f32 (v5e has no bf16 VALU), then store only a bf16 copy.
    h1 = jnp.maximum(h1 + b1_ref[...], 0.0).astype(jnp.bfloat16)   # (TB, H)

    # Layer 2: H x H matmul — bf16 MXU inputs, f32 accumulation.
    h2 = jnp.dot(h1, w2_ref[...], preferred_element_type=jnp.float32)
    h2 = jnp.maximum(h2 + b2_ref[...], 0.0).astype(jnp.bfloat16)   # (TB, H)

    # Layer 3 (H -> 1): also on the MXU (it has slack); no lane reduction.
    q = jnp.dot(h2, w3_ref[...], preferred_element_type=jnp.float32)  # (TB,1)
    o_ref[...] = (q + b3_ref[0, 0]).astype(o_ref.dtype)        # b3 from SMEM


def prepare_qnetwork_params(params, state_dim):
    """One-time (per param update) conversion to the kernel-ready layout.

    Splits W1 by rows (state/action halves), casts matmul operands to bf16,
    keeps biases in f32.  Call this once and reuse the result for every
    forward pass so no weight casting / slicing runs on the hot path.
    """
    w1 = params["w1"]
    return {
        "w1s": w1[:state_dim].astype(jnp.bfloat16),            # (Ds, H)
        "w1a": w1[state_dim:].astype(jnp.bfloat16),            # (Da, H)
        "b1": params["b1"].astype(jnp.float32).reshape(1, -1),  # (1, H)
        "w2": params["w2"].astype(jnp.bfloat16),               # (H, H)
        "b2": params["b2"].astype(jnp.float32).reshape(1, -1),  # (1, H)
        "w3": params["w3"].astype(jnp.bfloat16),                # (H, 1)
        "b3": params["b3"].astype(jnp.float32).reshape(1, 1),   # (1, 1) -> SMEM
    }


def _pick_batch_tile(B):
    """>=2 grid steps when possible (v7x megacore), capped for huge batches."""
    if B <= _MIN_SPLit_BATCH if False else B <= _MIN_SPLIT_BATCH:
        return B
    tb = min(_MAX_BATCH_TILE, _round_up(pl.cdiv(B, 2), 8))
    return min(tb, B)


@functools.partial(jax.jit, static_argnames=("batch_tile",))
def qnetwork_forward(state, action, prepared, *, batch_tile=None):
    """Pallas-backed forward pass of the SAC Q-network.

    Args:
      state:    (B, state_dim) float32
      action:   (B, action_dim) float32
      prepared: output of prepare_qnetwork_params()
      batch_tile: optional static override of the batch tile size.
    Returns:
      q_value: (B, 1) float32
    """
    B, state_dim = state.shape
    action_dim = action.shape[1]

    if batch_tile is not None:
        tb = min(batch_tile, B)
    else:
        tb = _pick_batch_tile(B)
    grid = (pl.cdiv(B, tb),)

    # Weights/biases: whole array as one block, same block every grid step
    # -> loaded into VMEM once and resident across the batch loop.
    def resident(arr):
        return pl.BlockSpec(arr.shape, lambda i: (0,) * arr.ndim)

    out = pl.pallas_call(
        _qnet_kernel,
        out_shape=jax.ShapeDtypeStruct((B, 1), jnp.float32),
        grid_spec=pltpu.PrefetchScalarGridSpec(
            num_scalar_prefetch=0,
            grid=grid,
            in_specs=[
                pl.BlockSpec((tb, state_dim), lambda i: (i, 0)),   # state tile
                pl.BlockSpec((tb, action_dim), lambda i: (i, 0)),  # action tile
                resident(prepared["w1s"]),
                resident(prepared["w1a"]),
                resident(prepared["b1"]),
                resident(prepared["w2"]),
                resident(prepared["b2"]),
                resident(prepared["w3"]),
                pl.BlockSpec(memory_space=pltpu.MemorySpace.SMEM),  # b3 scalar
            ],
            out_specs=pl.BlockSpec((tb, 1), lambda i: (i, 0)),
        ),
        compiler_params=pltpu.CompilerParams(
            dimension_semantics=("parallel",),
            vmem_limit_bytes=48 * 1024 * 1024,
        ),
    )(state, action, prepared["w1s"], prepared["w1a"], prepared["b1"],
      prepared["w2"], prepared["b2"], prepared["w3"], prepared["b3"])
    return out


def init_qnetwork_params(key, state_dim, action_dim, hidden_dim=256):
    """Deterministic init matching nn.Linear default: U(-1/sqrt(fan_in), +)."""
    d_in = state_dim + action_dim
    keys = jax.random.split(key, 6)

    def linear(kw, kb, fan_in, fan_out):
        bound = 1.0 / jnp.sqrt(jnp.asarray(fan_in, jnp.float32))
        w = jax.random.uniform(kw, (fan_in, fan_out), jnp.float32, -bound, bound)
        b = jax.random.uniform(kb, (1, fan_out), jnp.float32, -bound, bound)
        return w, b

    w1, b1 = linear(keys[0], keys[1], d_in, hidden_dim)
    w2, b2 = linear(keys[2], keys[3], hidden_dim, hidden_dim)
    w3, b3 = linear(keys[4], keys[5], hidden_dim, 1)
    return {"w1": w1, "b1": b1, "w2": w2, "b2": b2, "w3": w3, "b3": b3}


def qnetwork_reference(state, action, params):
    """Pure-JAX f32 reference for correctness checking."""
    x = jnp.concatenate([state, action], axis=-1)
    h1 = jnp.maximum(x @ params["w1"] + params["b1"], 0.0)
    h2 = jnp.maximum(h1 @ params["w2"] + params["b2"], 0.0)
    return h2 @ params["w3"] + params["b3"]


if __name__ == "__main__":
    # Test 1: small shapes (batch=8, state_dim=8, action_dim=4, hidden=32).
    B, STATE_DIM, ACTION_DIM, HIDDEN = 8, 8, 4, 32

    key = jax.random.PRNGKey(0)
    k_s, k_a, k_p = jax.random.split(key, 3)

    state = jax.random.normal(k_s, (B, STATE_DIM), jnp.float32)
    action = jax.random.normal(k_a, (B, ACTION_DIM), jnp.float32)
    params = init_qnetwork_params(k_p, STATE_DIM, ACTION_DIM, HIDDEN)
    prepared = jax.tree_util.tree_map(
        jax.block_until_ready, prepare_qnetwork_params(params, STATE_DIM))

    q = jax.block_until_ready(qnetwork_forward(state, action, prepared))
    q_ref = qnetwork_reference(state, action, params)
    assert q.shape == (B, 1), q.shape
    # bf16 MXU inputs / bf16 intermediates (f32 accumulation) vs f32 reference.
    assert jnp.allclose(q, q_ref, atol=5e-2, rtol=5e-2), (q, q_ref)

    # Test 2: default hidden_dim=256 and B=256 — automatic tile selection
    # gives tb=128, i.e. a 2-step batch grid (both v7x cores get work).
    B2, H2 = 256, 256
    k_s2, k_a2, k_p2 = jax.random.split(jax.random.PRNGKey(1), 3)
    state2 = jax.random.normal(k_s2, (B2, STATE_DIM), jnp.float32)
    action2 = jax.random.normal(k_a2, (B2, ACTION_DIM), jnp.float32)
    params2 = init_qnetwork_params(k_p2, STATE_DIM, ACTION_DIM, H2)
    prepared2 = prepare_qnetwork_params(params2, STATE_DIM)

    q2 = jax.block_until_ready(qnetwork_forward(state2, action2, prepared2))
    q2_ref = qnetwork_reference(state2, action2, params2)
    assert q2.shape == (B2, 1), q2.shape
    assert jnp.allclose(q2, q2_ref, atol=5e-2, rtol=5e-2), (
        float(jnp.max(jnp.abs(q2 - q2_ref))))

    # Test 3: explicit batch_tile override with a non-dividing tile (partial
    # last block) to exercise padded-row writeback masking.
    q3 = jax.block_until_ready(
        qnetwork_forward(state2, action2, prepared2, batch_tile=96))
    assert jnp.allclose(q3, q2_ref, atol=5e-2, rtol=5e-2)

    print("KERNEL_OK")
</pallas_src>

<mosaic_0001>
module attributes {stable_mosaic.version = 11 : i64} {
  func.func @_qnet_kernel(%arg0: i32, %arg1: memref<8x8xf32, #tpu.memory_space<vmem>>, %arg2: memref<8x4xf32, #tpu.memory_space<vmem>>, %arg3: memref<8x32xbf16, #tpu.memory_space<vmem>>, %arg4: memref<4x32xbf16, #tpu.memory_space<vmem>>, %arg5: memref<1x32xf32, #tpu.memory_space<vmem>>, %arg6: memref<32x32xbf16, #tpu.memory_space<vmem>>, %arg7: memref<1x32xf32, #tpu.memory_space<vmem>>, %arg8: memref<32x1xbf16, #tpu.memory_space<vmem>>, %arg9: memref<1x1xf32, #tpu.memory_space<smem>>, %arg10: memref<8x1xf32, #tpu.memory_space<vmem>>) attributes {dimension_semantics = [#tpu.dimension_semantics<parallel>], iteration_bounds = array<i64: 1>, scalar_prefetch = 0 : i64, scratch_operands = 0 : i64, tpu.core_type = #tpu.core_type<tc>, window_params = [{transform_indices = @transform_0, window_bounds = array<i64: 8, 8>}, {transform_indices = @transform_1, window_bounds = array<i64: 8, 4>}, {pipeline_mode = #tpu.pipeline_mode<synchronous>, transform_indices = @transform_2, window_bounds = array<i64: 8, 32>}, {pipeline_mode = #tpu.pipeline_mode<synchronous>, transform_indices = @transform_3, window_bounds = array<i64: 4, 32>}, {pipeline_mode = #tpu.pipeline_mode<synchronous>, transform_indices = @transform_4, window_bounds = array<i64: 1, 32>}, {pipeline_mode = #tpu.pipeline_mode<synchronous>, transform_indices = @transform_5, window_bounds = array<i64: 32, 32>}, {pipeline_mode = #tpu.pipeline_mode<synchronous>, transform_indices = @transform_6, window_bounds = array<i64: 1, 32>}, {pipeline_mode = #tpu.pipeline_mode<synchronous>, transform_indices = @transform_7, window_bounds = array<i64: 32, 1>}, {transform_indices = @transform_8, window_bounds = array<i64: 1, 1>}, {transform_indices = @transform_9, window_bounds = array<i64: 8, 1>}]} {
    %c0 = arith.constant 0 : index
    %c0_0 = arith.constant 0 : index
    %0 = vector.load %arg1[%c0, %c0_0] : memref<8x8xf32, #tpu.memory_space<vmem>>, vector<8x8xf32>
    %1 = arith.truncf %0 : vector<8x8xf32> to vector<8x8xbf16>
    %c0_1 = arith.constant 0 : index
    %c0_2 = arith.constant 0 : index
    %2 = vector.load %arg2[%c0_1, %c0_2] : memref<8x4xf32, #tpu.memory_space<vmem>>, vector<8x4xf32>
    %3 = arith.truncf %2 : vector<8x4xf32> to vector<8x4xbf16>
    %c0_3 = arith.constant 0 : index
    %c0_4 = arith.constant 0 : index
    %4 = vector.load %arg3[%c0_3, %c0_4] : memref<8x32xbf16, #tpu.memory_space<vmem>>, vector<8x32xbf16>
    %cst = arith.constant dense<0.000000e+00> : vector<8x32xf32>
    %5 = tpu.matmul %1, %4, %cst {dimension_numbers = #tpu.dot_dimension_numbers<[1], [0], [0], [1], [0, 0, 1, 1], [], []>} : vector<8x8xbf16>, vector<8x32xbf16>, vector<8x32xf32> -> vector<8x32xf32>
    %c0_5 = arith.constant 0 : index
    %c0_6 = arith.constant 0 : index
    %6 = vector.load %arg4[%c0_5, %c0_6] : memref<4x32xbf16, #tpu.memory_space<vmem>>, vector<4x32xbf16>
    %cst_7 = arith.constant dense<0.000000e+00> : vector<8x32xf32>
    %7 = tpu.matmul %3, %6, %cst_7 {dimension_numbers = #tpu.dot_dimension_numbers<[1], [0], [0], [1], [0, 0, 1, 1], [], []>} : vector<8x4xbf16>, vector<4x32xbf16>, vector<8x32xf32> -> vector<8x32xf32>
    %8 = arith.addf %5, %7 : vector<8x32xf32>
    %c0_8 = arith.constant 0 : index
    %c0_9 = arith.constant 0 : index
    %9 = vector.load %arg5[%c0_8, %c0_9] : memref<1x32xf32, #tpu.memory_space<vmem>>, vector<1x32xf32>
    %10 = vector.broadcast %9 : vector<1x32xf32> to vector<8x32xf32>
    %11 = arith.addf %8, %10 : vector<8x32xf32>
    %cst_10 = arith.constant 0.000000e+00 : f32
    %12 = vector.broadcast %cst_10 : f32 to vector<8x32xf32>
    %13 = arith.maximumf %11, %12 : vector<8x32xf32>
    %14 = arith.truncf %13 : vector<8x32xf32> to vector<8x32xbf16>
    %c0_11 = arith.constant 0 : index
    %c0_12 = arith.constant 0 : index
    %15 = vector.load %arg6[%c0_11, %c0_12] : memref<32x32xbf16, #tpu.memory_space<vmem>>, vector<32x32xbf16>
    %cst_13 = arith.constant dense<0.000000e+00> : vector<8x32xf32>
    %16 = tpu.matmul %14, %15, %cst_13 {dimension_numbers = #tpu.dot_dimension_numbers<[1], [0], [0], [1], [0, 0, 1, 1], [], []>} : vector<8x32xbf16>, vector<32x32xbf16>, vector<8x32xf32> -> vector<8x32xf32>
    %c0_14 = arith.constant 0 : index
    %c0_15 = arith.constant 0 : index
    %17 = vector.load %arg7[%c0_14, %c0_15] : memref<1x32xf32, #tpu.memory_space<vmem>>, vector<1x32xf32>
    %18 = vector.broadcast %17 : vector<1x32xf32> to vector<8x32xf32>
    %19 = arith.addf %16, %18 : vector<8x32xf32>
    %cst_16 = arith.constant 0.000000e+00 : f32
    %20 = vector.broadcast %cst_16 : f32 to vector<8x32xf32>
    %21 = arith.maximumf %19, %20 : vector<8x32xf32>
    %22 = arith.truncf %21 : vector<8x32xf32> to vector<8x32xbf16>
    %c0_17 = arith.constant 0 : index
    %c0_18 = arith.constant 0 : index
    %23 = vector.load %arg8[%c0_17, %c0_18] : memref<32x1xbf16, #tpu.memory_space<vmem>>, vector<32x1xbf16>
    %cst_19 = arith.constant dense<0.000000e+00> : vector<8x1xf32>
    %24 = tpu.matmul %22, %23, %cst_19 {dimension_numbers = #tpu.dot_dimension_numbers<[1], [0], [0], [1], [0, 0, 1, 1], [], []>} : vector<8x32xbf16>, vector<32x1xbf16>, vector<8x1xf32> -> vector<8x1xf32>
    %c0_20 = arith.constant 0 : index
    %c0_21 = arith.constant 0 : index
    %25 = memref.load %arg9[%c0_20, %c0_21] : memref<1x1xf32, #tpu.memory_space<smem>>
    %26 = vector.broadcast %25 : f32 to vector<8x1xf32>
    %27 = arith.addf %24, %26 : vector<8x1xf32>
    %c0_22 = arith.constant 0 : index
    %c0_23 = arith.constant 0 : index
    %28 = vector.load %arg10[%c0_22, %c0_23] : memref<8x1xf32, #tpu.memory_space<vmem>>, vector<8x1xf32>
    tpu.vector_store %arg10[%c0_22, %c0_23], %27 {strides = array<i32>} : memref<8x1xf32, #tpu.memory_space<vmem>>, vector<8x1xf32>,
    return
  }
  func.func @transform_0(%arg0: i32) -> (i32, i32) {
    %c0_i32 = arith.constant 0 : i32
    %c0_i32_0 = arith.constant 0 : i32
    return %arg0, %c0_i32 : i32, i32
  }
  func.func @transform_1(%arg0: i32) -> (i32, i32) {
    %c0_i32 = arith.constant 0 : i32
    %c0_i32_0 = arith.constant 0 : i32
    return %arg0, %c0_i32 : i32, i32
  }
  func.func @transform_2(%arg0: i32) -> (i32, i32) {
    %c0_i32 = arith.constant 0 : i32
    %c0_i32_0 = arith.constant 0 : i32
    %c0_i32_1 = arith.constant 0 : i32
    return %c0_i32, %c0_i32_0 : i32, i32
  }
  func.func @transform_3(%arg0: i32) -> (i32, i32) {
    %c0_i32 = arith.constant 0 : i32
    %c0_i32_0 = arith.constant 0 : i32
    %c0_i32_1 = arith.constant 0 : i32
    return %c0_i32, %c0_i32_0 : i32, i32
  }
  func.func @transform_4(%arg0: i32) -> (i32, i32) {
    %c0_i32 = arith.constant 0 : i32
    %c0_i32_0 = arith.constant 0 : i32
    %c0_i32_1 = arith.constant 0 : i32
    return %c0_i32, %c0_i32_0 : i32, i32
  }
  func.func @transform_5(%arg0: i32) -> (i32, i32) {
    %c0_i32 = arith.constant 0 : i32
    %c0_i32_0 = arith.constant 0 : i32
    %c0_i32_1 = arith.constant 0 : i32
    return %c0_i32, %c0_i32_0 : i32, i32
  }
  func.func @transform_6(%arg0: i32) -> (i32, i32) {
    %c0_i32 = arith.constant 0 : i32
    %c0_i32_0 = arith.constant 0 : i32
    %c0_i32_1 = arith.constant 0 : i32
    return %c0_i32, %c0_i32_0 : i32, i32
  }
  func.func @transform_7(%arg0: i32) -> (i32, i32) {
    %c0_i32 = arith.constant 0 : i32
    %c0_i32_0 = arith.constant 0 : i32
    %c0_i32_1 = arith.constant 0 : i32
    return %c0_i32, %c0_i32_0 : i32, i32
  }
  func.func @transform_8(%arg0: i32) -> (i32, i32) {
    %c0_i32 = arith.constant 0 : i32
    %c0_i32_0 = arith.constant 0 : i32
    %c0_i32_1 = arith.constant 0 : i32
    return %c0_i32, %c0_i32_0 : i32, i32
  }
  func.func @transform_9(%arg0: i32) -> (i32, i32) {
    %c0_i32 = arith.constant 0 : i32
    %c0_i32_0 = arith.constant 0 : i32
    return %arg0, %c0_i32 : i32, i32
  }
}

</mosaic_0001>

<llo_original>
// kernel: qnetwork_forward.1
$region0: #{qnetwork_forward.1}
  #allocation0 [shape = 'u32[]', space=smem, size = 0x4, offset = 0x4, fixed_abs, tag = 'smem constant byte address 0x4 - core index']
  #allocation1 [shape = 'u32[144,128]{1,0:T(1,128)}', space=vmem, size = 0x12000, scoped, tag = 'internal scratch']
  #allocation2 [shape = 'f32[1,1]{1,0:T(1,128)S(6)}', space=smem, size = 0x200, scoped, tag = 'scoped memory for qnetwork_forward.1']
  %s0 = inlined_call_operand.vmem [shape: f32[8,8], index: 0, kind: input, shape index: {}]
  %s1 = inlined_call_operand.vmem [shape: f32[8,4], index: 1, kind: input, shape index: {}]
  %s2 = inlined_call_operand.vmem [shape: bf16[8,32], index: 2, kind: input, shape index: {}]
  %s3 = inlined_call_operand.vmem [shape: bf16[4,32], index: 3, kind: input, shape index: {}]
  %s4 = inlined_call_operand.vmem [shape: f32[1,32], index: 4, kind: input, shape index: {}]
  %s5 = inlined_call_operand.vmem [shape: bf16[32,32], index: 5, kind: input, shape index: {}]
  %s6 = inlined_call_operand.vmem [shape: f32[1,32], index: 6, kind: input, shape index: {}]
  %s7 = inlined_call_operand.vmem [shape: bf16[32,1], index: 7, kind: input, shape index: {}]
  %s8 = inlined_call_operand.<no memory space> [shape: f32[1,1], index: 8, kind: input, shape index: {}]
  %s9 = inlined_call_operand.vmem [shape: f32[8,1], index: 9, kind: output, shape index: {}]
  %s10 = sld [smem:[#allocation0]]
  $region46: #{qnetwork_forward.1} parent=0
    _
  %s12 = ssub.s32 1, %s10
  %s13 = scalar_select 0, %s12, %s10
  %14 = sst [smem:[#allocation2]] %s8
  // Predicated region
  $region2: #{qnetwork_forward.1} parent=0 // pred_check
    _
  $region3: #{qnetwork_forward.1} parent=0 // pred_check_branch
    %16 = sbr.rel (0) target = $region5
  $region4: #{qnetwork_forward.1} parent=0 // pred_region
    _
  $region5: #{qnetwork_forward.1} parent=0 // pred_fallthru
    _
  // Predicated region
  $region6: #{qnetwork_forward.1} parent=0 // pred_check
    _
  $region7: #{qnetwork_forward.1} parent=0 // pred_check_branch
    %18 = sbr.rel (0) target = $region9
  $region8: #{qnetwork_forward.1} parent=0 // pred_region
    _
  $region9: #{qnetwork_forward.1} parent=0 // pred_fallthru
    _
  // Predicated region
  $region10: #{qnetwork_forward.1} parent=0 // pred_check
    _
  $region11: #{qnetwork_forward.1} parent=0 // pred_check_branch
    %20 = sbr.rel (0) target = $region13
  $region12: #{qnetwork_forward.1} parent=0 // pred_region
    _
  $region13: #{qnetwork_forward.1} parent=0 // pred_fallthru
    _
  // Predicated region
  $region14: #{qnetwork_forward.1} parent=0 // pred_check
    _
  $region15: #{qnetwork_forward.1} parent=0 // pred_check_branch
    %22 = sbr.rel (0) target = $region17
  $region16: #{qnetwork_forward.1} parent=0 // pred_region
    _
  $region17: #{qnetwork_forward.1} parent=0 // pred_fallthru
    _
  // Predicated region
  $region18: #{qnetwork_forward.1} parent=0 // pred_check
    _
  $region19: #{qnetwork_forward.1} parent=0 // pred_check_branch
    %24 = sbr.rel (0) target = $region21
  $region20: #{qnetwork_forward.1} parent=0 // pred_region
    _
  $region21: #{qnetwork_forward.1} parent=0 // pred_fallthru
    _
  // Predicated region
  $region22: #{qnetwork_forward.1} parent=0 // pred_check
    _
  $region23: #{qnetwork_forward.1} parent=0 // pred_check_branch
    %26 = sbr.rel (0) target = $region25
  $region24: #{qnetwork_forward.1} parent=0 // pred_region
    _
  $region25: #{qnetwork_forward.1} parent=0 // pred_fallthru
    _
  // Predicated region
  $region26: #{qnetwork_forward.1} parent=0 // pred_check
    _
  $region27: #{qnetwork_forward.1} parent=0 // pred_check_branch
    %28 = sbr.rel (0) target = $region29
  $region28: #{qnetwork_forward.1} parent=0 // pred_region
    _
  $region29: #{qnetwork_forward.1} parent=0 // pred_fallthru
    _
  // Predicated region
  $region30: #{qnetwork_forward.1} parent=0 // pred_check
    _
  $region31: #{qnetwork_forward.1} parent=0 // pred_check_branch
    %30 = sbr.rel (0) target = $region33
  $region32: #{qnetwork_forward.1} parent=0 // pred_region
    _
  $region33: #{qnetwork_forward.1} parent=0 // pred_fallthru
    _
  // Predicated region
  $region34: #{qnetwork_forward.1} parent=0 // pred_check
    _
  $region35: #{qnetwork_forward.1} parent=0 // pred_check_branch
    %32 = sbr.rel (0) target = $region37
  $region36: #{qnetwork_forward.1} parent=0 // pred_region
    _
  $region37: #{qnetwork_forward.1} parent=0 // pred_fallthru
    _
  %v34 = vld [vmem:[%s0] sm:$0xff]
  %v35 = vpack.c.bf16 %v34, %v34
  %v36 = vld [vmem:[%s1] sm:$0xff]
  %v37 = vpack.c.bf16 %v36, %v36
  %v38 = vld [vmem:[%s2] sm:$0xf]
  %v39 = vld [vmem:[%s3] sm:$0x3]
  %vm40 = vcmask 31744
  %v42 = vsel %vm40, %v37, 0
  %vm44 = vcmask 1041408
  %v46 = vsel %vm44, %v39, 0
  %48 = vmatprep.subr.bf16.mxu0 0
  %49 = vmatpush1.bf16.msra.mxu0 %v46
  %50 = vmatprep.subr.bf16.mxu0 0
  %51 = vmatpush1.bf16.msra.mxu0 0
  %52 = vmatprep.subr.bf16.mxu0 0
  %53 = vmatpush1.bf16.msra.mxu0 0
  %54 = vmatprep.subr.bf16.mxu0 0
  %55 = vmatpush1.bf16.msra.mxu0 0
  %56 = vmatprep.subr.bf16.mxu0 0
  %57 = vmatpush1.bf16.msra.mxu0 0
  %58 = vmatprep.subr.bf16.mxu0 0
  %59 = vmatpush1.bf16.msra.mxu0 0
  %60 = vmatprep.subr.bf16.mxu0 0
  %61 = vmatpush1.bf16.msra.mxu0 0
  %62 = vmatprep.subr.bf16.mxu0 0
  %63 = vmatpush1.bf16.msra.mxu0 0
  %64 = vmatprep.subr.bf16.mxu0 0
  %65 = vmatpush1.bf16.msra.mxu0 0
  %66 = vmatprep.subr.bf16.mxu0 0
  %67 = vmatpush1.bf16.msra.mxu0 0
  %68 = vmatprep.subr.bf16.mxu0 0
  %69 = vmatpush1.bf16.msra.mxu0 0
  %70 = vmatprep.subr.bf16.mxu0 0
  %71 = vmatpush1.bf16.msra.mxu0 0
  %72 = vmatprep.subr.bf16.mxu0 0
  %73 = vmatpush1.bf16.msra.mxu0 0
  %74 = vmatprep.subr.bf16.mxu0 0
  %75 = vmatpush1.bf16.msra.mxu0 0
  %76 = vmatprep.subr.bf16.mxu0 0
  %77 = vmatpush1.bf16.msra.mxu0 0
  %78 = vmatprep.subr.bf16.mxu0 0
  %79 = vmatpush1.bf16.msra.mxu0 0
  %80 = vmatprep.mubr.bf16.mxu0 0
  %81 = vmatmul.mubr.bf16.gmra.mrb[0].mxu0 %v42
  %v82 = vpop.f32.mrb[0].mxu0
  %v83 = vadd.f32 0.0, %v82
  %v84 = vpop.f32.mrb[0].mxu0
  %v85 = vpop.f32.mrb[0].mxu0
  %v86 = vpop.f32.mrb[0].mxu0
  %87 = vdwg.mxu0
  %vm88 = vcmask 64512
  %v90 = vsel %vm88, %v35, 0
  %vm92 = vcmask 1043456
  %v94 = vsel %vm92, %v38, 0
  %96 = vmatprep.subr.bf16.mxu0 0
  %97 = vmatpush1.bf16.msra.mxu0 %v94
  %98 = vmatprep.subr.bf16.mxu0 0
  %99 = vmatpush1.bf16.msra.mxu0 0
  %100 = vmatprep.subr.bf16.mxu0 0
  %101 = vmatpush1.bf16.msra.mxu0 0
  %102 = vmatprep.subr.bf16.mxu0 0
  %103 = vmatpush1.bf16.msra.mxu0 0
  %104 = vmatprep.subr.bf16.mxu0 0
  %105 = vmatpush1.bf16.msra.mxu0 0
  %106 = vmatprep.subr.bf16.mxu0 0
  %107 = vmatpush1.bf16.msra.mxu0 0
  %108 = vmatprep.subr.bf16.mxu0 0
  %109 = vmatpush1.bf16.msra.mxu0 0
  %110 = vmatprep.subr.bf16.mxu0 0
  %111 = vmatpush1.bf16.msra.mxu0 0
  %112 = vmatprep.subr.bf16.mxu0 0
  %113 = vmatpush1.bf16.msra.mxu0 0
  %114 = vmatprep.subr.bf16.mxu0 0
  %115 = vmatpush1.bf16.msra.mxu0 0
  %116 = vmatprep.subr.bf16.mxu0 0
  %117 = vmatpush1.bf16.msra.mxu0 0
  %118 = vmatprep.subr.bf16.mxu0 0
  %119 = vmatpush1.bf16.msra.mxu0 0
  %120 = vmatprep.subr.bf16.mxu0 0
  %121 = vmatpush1.bf16.msra.mxu0 0
  %122 = vmatprep.subr.bf16.mxu0 0
  %123 = vmatpush1.bf16.msra.mxu0 0
  %124 = vmatprep.subr.bf16.mxu0 0
  %125 = vmatpush1.bf16.msra.mxu0 0
  %126 = vmatprep.subr.bf16.mxu0 0
  %127 = vmatpush1.bf16.msra.mxu0 0
  %128 = vmatprep.mubr.bf16.mxu0 0
  %129 = vmatmul.mubr.bf16.gmra.mrb[0].mxu0 %v90
  %v130 = vpop.f32.mrb[0].mxu0
  %v131 = vadd.f32 %v83, %v130
  %v132 = vpop.f32.mrb[0].mxu0
  %v133 = vpop.f32.mrb[0].mxu0
  %v134 = vpop.f32.mrb[0].mxu0
  %135 = vdwg.mxu0
  %v136 = vld [vmem:[%s4] sm:$0x1]
  %v138 = vlaneseq
  %v139 = vshrl.u32 %v138, 7
  %v140 = vsub.s32 0, %v139
  %v141 = vrot.slane %v136, %v140
  %v143 = vadd.f32 %v131, %v141
  %v144 = vmax.f32 %v143, 0.0
  %v145 = vpack.c.bf16 %v144, %v144
  %v146 = vld [vmem:[%s5] sm:$0xf]
  %v147 = vld [vmem:[%s5 + $0x4] sm:$0xf]
  %v148 = vld [vmem:[%s5 + $0x8] sm:$0xf]
  %v149 = vld [vmem:[%s5 + $0xc] sm:$0xf]
  %v150 = vld [vmem:[%s6] sm:$0x1]
  %v152 = vlaneseq
  %v153 = vshrl.u32 %v152, 7
  %v154 = vsub.s32 0, %v153
  %v155 = vrot.slane %v150, %v154
  %v161 = vunpack.c.l.b16 %v146
  %v162 = vunpack.c.l.b16 %v147
  %v163 = vunpack.c.l.b16 %v148
  %v164 = vunpack.c.l.b16 %v149
  %v165 = vpack.c.b16 %v162, %v161
  %v166 = vpack.c.b16 %v164, %v163
  %vm169 = vcmask 261120
  %v171 = vsel %vm169, %v145, 0
  %173 = vmatprep.subr.bf16.mxu0 0
  %174 = vmatpush1.bf16.msra.mxu0 %v165
  %175 = vmatprep.subr.bf16.mxu0 0
  %176 = vmatpush1.bf16.msra.mxu0 %v166
  %177 = vmatprep.subr.bf16.mxu0 0
  %178 = vmatpush1.bf16.msra.mxu0 0
  %179 = vmatprep.subr.bf16.mxu0 0
  %180 = vmatpush1.bf16.msra.mxu0 0
  %181 = vmatprep.subr.bf16.mxu0 0
  %182 = vmatpush1.bf16.msra.mxu0 0
  %183 = vmatprep.subr.bf16.mxu0 0
  %184 = vmatpush1.bf16.msra.mxu0 0
  %185 = vmatprep.subr.bf16.mxu0 0
  %186 = vmatpush1.bf16.msra.mxu0 0
  %187 = vmatprep.subr.bf16.mxu0 0
  %188 = vmatpush1.bf16.msra.mxu0 0
  %189 = vmatprep.subr.bf16.mxu0 0
  %190 = vmatpush1.bf16.msra.mxu0 0
  %191 = vmatprep.subr.bf16.mxu0 0
  %192 = vmatpush1.bf16.msra.mxu0 0
  %193 = vmatprep.subr.bf16.mxu0 0
  %194 = vmatpush1.bf16.msra.mxu0 0
  %195 = vmatprep.subr.bf16.mxu0 0
  %196 = vmatpush1.bf16.msra.mxu0 0
  %197 = vmatprep.subr.bf16.mxu0 0
  %198 = vmatpush1.bf16.msra.mxu0 0
  %199 = vmatprep.subr.bf16.mxu0 0
  %200 = vmatpush1.bf16.msra.mxu0 0
  %201 = vmatprep.subr.bf16.mxu0 0
  %202 = vmatpush1.bf16.msra.mxu0 0
  %203 = vmatprep.subr.bf16.mxu0 0
  %204 = vmatpush1.bf16.msra.mxu0 0
  %205 = vmatprep.mubr.bf16.mxu0 0
  %206 = vmatmul.mubr.bf16.gmra.mrb[0].mxu0 %v171
  %v207 = vpop.f32.mrb[0].mxu0
  %v208 = vadd.f32 %v155, %v207
  %v209 = vpop.f32.mrb[0].mxu0
  %v210 = vpop.f32.mrb[0].mxu0
  %v211 = vpop.f32.mrb[0].mxu0
  %212 = vdwg.mxu0
  %v213 = vmax.f32 %v208, 0.0
  %v214 = vpack.c.bf16 %v213, %v213
  %v215 = vld [vmem:[%s7] sm:$0xf]
  %v216 = vld [vmem:[%s7 + $0x4] sm:$0xf]
  %v217 = vld [vmem:[%s7 + $0x8] sm:$0xf]
  %v218 = vld [vmem:[%s7 + $0xc] sm:$0xf]
  %s219 = sld [smem:[#allocation2]]
  %v220 = vstv %s219
  %v225 = vunpack.c.l.b16 %v215
  %v226 = vunpack.c.l.b16 %v216
  %v227 = vunpack.c.l.b16 %v217
  %v228 = vunpack.c.l.b16 %v218
  %v229 = vpack.c.b16 %v226, %v225
  %v230 = vpack.c.b16 %v228, %v227
  %v234 = vsel %vm169, %v214, 0
  %236 = vmatprep.subr.bf16.mxu0 0
  %237 = vmatpush1.bf16.msra.mxu0 %v229
  %238 = vmatprep.subr.bf16.mxu0 0
  %239 = vmatpush1.bf16.msra.mxu0 %v230
  %240 = vmatprep.subr.bf16.mxu0 0
  %241 = vmatpush1.bf16.msra.mxu0 0
  %242 = vmatprep.subr.bf16.mxu0 0
  %243 = vmatpush1.bf16.msra.mxu0 0
  %244 = vmatprep.subr.bf16.mxu0 0
  %245 = vmatpush1.bf16.msra.mxu0 0
  %246 = vmatprep.subr.bf16.mxu0 0
  %247 = vmatpush1.bf16.msra.mxu0 0
  %248 = vmatprep.subr.bf16.mxu0 0
  %249 = vmatpush1.bf16.msra.mxu0 0
  %250 = vmatprep.subr.bf16.mxu0 0
  %251 = vmatpush1.bf16.msra.mxu0 0
  %252 = vmatprep.subr.bf16.mxu0 0
  %253 = vmatpush1.bf16.msra.mxu0 0
  %254 = vmatprep.subr.bf16.mxu0 0
  %255 = vmatpush1.bf16.msra.mxu0 0
  %256 = vmatprep.subr.bf16.mxu0 0
  %257 = vmatpush1.bf16.msra.mxu0 0
  %258 = vmatprep.subr.bf16.mxu0 0
  %259 = vmatpush1.bf16.msra.mxu0 0
  %260 = vmatprep.subr.bf16.mxu0 0
  %261 = vmatpush1.bf16.msra.mxu0 0
  %262 = vmatprep.subr.bf16.mxu0 0
  %263 = vmatpush1.bf16.msra.mxu0 0
  %264 = vmatprep.subr.bf16.mxu0 0
  %265 = vmatpush1.bf16.msra.mxu0 0
  %266 = vmatprep.subr.bf16.mxu0 0
  %267 = vmatpush1.bf16.msra.mxu0 0
  %268 = vmatprep.mubr.bf16.mxu0 0
  %269 = vmatmul.mubr.bf16.gmra.mrb[0].mxu0 %v234
  %v270 = vpop.f32.mrb[0].mxu0
  %v271 = vadd.f32 %v220, %v270
  %v272 = vpop.f32.mrb[0].mxu0
  %v273 = vpop.f32.mrb[0].mxu0
  %v274 = vpop.f32.mrb[0].mxu0
  %275 = vdwg.mxu0
  %vm276 = vcmask 7168
  %277 = vst.msk [vmem:[%s9] sm:$0xff] %vm276, %v271
  // Predicated region
  $region38: #{qnetwork_forward.1} parent=0 // pred_check
    _
  $region39: #{qnetwork_forward.1} parent=0 // pred_check_branch
    %279 = sbr.rel (0) target = $region41
  $region40: #{qnetwork_forward.1} parent=0 // pred_region
    _
  $region41: #{qnetwork_forward.1} parent=0 // pred_fallthru
    _
  // Predicated region
  $region42: #{qnetwork_forward.1} parent=0 // pred_check
    _
  $region43: #{qnetwork_forward.1} parent=0 // pred_check_branch
    %281 = sbr.rel (0) target = $region45
  $region44: #{qnetwork_forward.1} parent=0 // pred_region
    _
  $region45: #{qnetwork_forward.1} parent=0 // pred_fallthru
    _

</llo_original>
